<compile_context>
chip_gen: v6e
topology: v6e:2x2x1
jax: 0.10.0
libtpu: 0.0.40
codegen_flags: <defaults>
</compile_context>

<pallas_src>
import math
from functools import partial

import jax
import jax.numpy as jnp
from jax.experimental import pallas as pl
from jax.experimental.pallas import tpu as pltpu

LANE = 128
SUBLANE = 8


def _round_up(x, m):
    return ((x + m - 1) // m) * m


# ----------------------------- Pallas kernel ---------------------------------
def _time_embedding_kernel(t_ref, fp_ref, w1_ref, w2_ref, bias_ref, out_ref):
    # t_ref:    [TB, 1]    float32 timestep values (padded rows are zero)
    # fp_ref:   [2, DMp]   row 0 = per-lane frequency, row 1 = per-lane phase
    #                      (freq = phase = 0 on padded lanes -> emb exactly 0)
    # w1_ref:   [DMp, Dp]
    # w2_ref:   [Dp, Dp]
    # bias_ref: [2, Dp]    row 0 = b1, row 1 = b2
    # out_ref:  [TB, Dp]
    freq = fp_ref[0:1, :]
    phase = fp_ref[1:2, :]

    # Sinusoidal embedding in one transcendental: sin(t*f)      on even lanes,
    #                                             sin(t*f+pi/2) = cos(t*f) on odd.
    ang = t_ref[...] * freq + phase                      # [TB, DMp] (broadcast)
    emb = jnp.sin(ang)

    h = jnp.dot(emb, w1_ref[...], preferred_element_type=jnp.float32) + bias_ref[0:1, :]
    h = h * jax.lax.logistic(h)                          # Swish (EUP sigmoid)
    y = jnp.dot(h, w2_ref[...], preferred_element_type=jnp.float32) + bias_ref[1:2, :]
    out_ref[...] = y.astype(out_ref.dtype)


# ------------------------------- wrapper --------------------------------------
@partial(jax.jit, static_argnames=("dim",))
def time_embedding_forward(t, fp_rows, w1p, w2p, bias_rows, *, dim):
    """t: int32 [B] -> float32 [B, dim]  (fused sinusoidal-emb + MLP)."""
    B = t.shape[0]
    DMp = fp_rows.shape[1]
    Dp = w1p.shape[1]

    # Batch padding / tiling: single grid step for small B, 128-row tiles
    # (split across cores via "parallel") when B is large.
    Bp = _round_up(max(B, SUBLANE), SUBLANE)
    if Bp > LANE:
        Bp = _round_up(Bp, LANE)
        TB = LANE
    else:
        TB = Bp
    n_tiles = Bp // TB

    # Timestep column in f32 (pad, no scatter; fuses under this jit).
    t_col = jnp.pad(t.astype(jnp.float32), (0, Bp - B)).reshape(Bp, 1)

    flops = 2 * Bp * Dp * (DMp + Dp)
    transcendentals = Bp * (DMp + Dp)                    # sin + logistic
    bytes_accessed = 4 * (Bp + 2 * DMp + DMp * Dp + Dp * Dp + 2 * Dp + Bp * Dp)

    out_p = pl.pallas_call(
        _time_embedding_kernel,
        out_shape=jax.ShapeDtypeStruct((Bp, Dp), jnp.float32),
        grid=(n_tiles,),
        in_specs=[
            pl.BlockSpec((TB, 1), lambda i: (i, 0)),
            pl.BlockSpec((2, DMp), lambda i: (0, 0)),
            pl.BlockSpec((DMp, Dp), lambda i: (0, 0)),
            pl.BlockSpec((Dp, Dp), lambda i: (0, 0)),
            pl.BlockSpec((2, Dp), lambda i: (0, 0)),
        ],
        out_specs=pl.BlockSpec((TB, Dp), lambda i: (i, 0)),
        compiler_params=pltpu.CompilerParams(
            dimension_semantics=("parallel",)),
        cost_estimate=pl.CostEstimate(
            flops=flops, transcendentals=transcendentals,
            bytes_accessed=bytes_accessed),
    )(t_col, fp_rows, w1p, w2p, bias_rows)

    return out_p[:B, :dim]


# ------------------------- parameter construction ----------------------------
def make_freq_phase_rows(d_model, dm_pad):
    """[2, dm_pad] rows: row0 = per-lane frequency, row1 = per-lane phase.

    Even lanes (sin): phase 0.  Odd lanes (cos): phase pi/2.
    Padded lanes (>= d_model): freq = phase = 0 -> sin(0) = 0 exactly.
    """
    lanes = jnp.arange(dm_pad)
    k = (lanes // 2).astype(jnp.float32)
    freq = jnp.exp(-(2.0 * k / d_model) * math.log(10000.0))
    valid = lanes < d_model
    freq = jnp.where(valid, freq, 0.0)
    phase = jnp.where(valid & (lanes % 2 == 1), jnp.float32(math.pi / 2), 0.0)
    return jnp.stack([freq, phase], axis=0).astype(jnp.float32)   # [2, dm_pad]


def pad2(x, rows, cols):
    return jnp.pad(x, ((0, rows - x.shape[0]), (0, cols - x.shape[1])))


def make_sinusoidal_table(T, d_model):
    """Reference-only: the exact table nn.Embedding.from_pretrained would hold."""
    assert d_model % 2 == 0
    freqs = jnp.exp(
        -(jnp.arange(0, d_model, 2, dtype=jnp.float32) / d_model) * math.log(10000.0))
    pos = jnp.arange(T, dtype=jnp.float32)
    ang = pos[:, None] * freqs[None, :]
    return jnp.stack([jnp.sin(ang), jnp.cos(ang)], axis=-1).reshape(T, d_model)


def xavier_uniform(key, fan_in, fan_out):
    bound = math.sqrt(6.0 / (fan_in + fan_out))
    # stored as [in, out] (transpose of PyTorch [out, in]); distribution identical
    return jax.random.uniform(key, (fan_in, fan_out), dtype=jnp.float32,
                              minval=-bound, maxval=bound)


# ---------------------------------- main --------------------------------------
if __name__ == "__main__":
    # Small, module-consistent shapes (same as original TimeEmbedding config).
    T = 16          # number of diffusion timesteps
    d_model = 32    # sinusoidal embedding width (must be even)
    dim = 64        # MLP hidden / output width
    B = 8           # batch of time indices

    DMp = _round_up(d_model, LANE)
    Dp = _round_up(dim, LANE)

    key = jax.random.PRNGKey(0)
    k_t, k_w1, k_w2 = jax.random.split(key, 3)

    # Deterministic parameters (xavier_uniform weights, zero biases).
    w1 = xavier_uniform(k_w1, d_model, dim)               # [d_model, dim]
    b1 = jnp.zeros((1, dim), dtype=jnp.float32)
    w2 = xavier_uniform(k_w2, dim, dim)                   # [dim, dim]
    b2 = jnp.zeros((1, dim), dtype=jnp.float32)

    # Lane-dense (128-padded), merged kernel operands.
    fp_rows = make_freq_phase_rows(d_model, DMp)          # [2, DMp]
    w1p = pad2(w1, DMp, Dp)                               # [DMp, Dp]
    w2p = pad2(w2, Dp, Dp)                                # [Dp, Dp]
    bias_rows = jnp.concatenate([pad2(b1, 1, Dp), pad2(b2, 1, Dp)], axis=0)  # [2, Dp]

    # Example input: integer timesteps in [0, T).
    t = jax.random.randint(k_t, (B,), 0, T, dtype=jnp.int32)

    out = time_embedding_forward(t, fp_rows, w1p, w2p, bias_rows, dim=dim)
    out = jax.block_until_ready(out)

    # Pure-JAX reference following the PyTorch module (table gather + MLP).
    table = make_sinusoidal_table(T, d_model)             # [T, d_model]
    emb_ref = jnp.take(table, t, axis=0)
    h_ref = emb_ref @ w1 + b1
    h_ref = h_ref * jax.nn.sigmoid(h_ref)
    ref = h_ref @ w2 + b2

    assert out.shape == (B, dim)
    assert jnp.allclose(out, ref, atol=1e-4, rtol=1e-4), (
        float(jnp.max(jnp.abs(out - ref))))

    print("KERNEL_OK")
</pallas_src>

<mosaic_0001>
module attributes {stable_mosaic.version = 11 : i64} {
  func.func @_time_embedding_kernel(%arg0: i32, %arg1: memref<8x1xf32, #tpu.memory_space<vmem>>, %arg2: memref<2x128xf32, #tpu.memory_space<vmem>>, %arg3: memref<128x128xf32, #tpu.memory_space<vmem>>, %arg4: memref<128x128xf32, #tpu.memory_space<vmem>>, %arg5: memref<2x128xf32, #tpu.memory_space<vmem>>, %arg6: memref<8x128xf32, #tpu.memory_space<vmem>>) attributes {dimension_semantics = [#tpu.dimension_semantics<parallel>], iteration_bounds = array<i64: 1>, scalar_prefetch = 0 : i64, scratch_operands = 0 : i64, tpu.core_type = #tpu.core_type<tc>, window_params = [{transform_indices = @transform_0, window_bounds = array<i64: 8, 1>}, {pipeline_mode = #tpu.pipeline_mode<synchronous>, transform_indices = @transform_1, window_bounds = array<i64: 2, 128>}, {pipeline_mode = #tpu.pipeline_mode<synchronous>, transform_indices = @transform_2, window_bounds = array<i64: 128, 128>}, {pipeline_mode = #tpu.pipeline_mode<synchronous>, transform_indices = @transform_3, window_bounds = array<i64: 128, 128>}, {pipeline_mode = #tpu.pipeline_mode<synchronous>, transform_indices = @transform_4, window_bounds = array<i64: 2, 128>}, {transform_indices = @transform_5, window_bounds = array<i64: 8, 128>}]} {
    %c0 = arith.constant 0 : index
    %c0_0 = arith.constant 0 : index
    %0 = vector.load %arg2[%c0, %c0_0] : memref<2x128xf32, #tpu.memory_space<vmem>>, vector<1x128xf32>
    %c1 = arith.constant 1 : index
    %c0_1 = arith.constant 0 : index
    %1 = vector.load %arg2[%c1, %c0_1] : memref<2x128xf32, #tpu.memory_space<vmem>>, vector<1x128xf32>
    %c0_2 = arith.constant 0 : index
    %c0_3 = arith.constant 0 : index
    %2 = vector.load %arg1[%c0_2, %c0_3] : memref<8x1xf32, #tpu.memory_space<vmem>>, vector<8x1xf32>
    %3 = vector.broadcast %2 : vector<8x1xf32> to vector<8x128xf32>
    %4 = vector.broadcast %0 : vector<1x128xf32> to vector<8x128xf32>
    %5 = arith.mulf %3, %4 : vector<8x128xf32>
    %6 = vector.broadcast %1 : vector<1x128xf32> to vector<8x128xf32>
    %7 = arith.addf %5, %6 : vector<8x128xf32>
    %8 = math.sin %7 : vector<8x128xf32>
    %c0_4 = arith.constant 0 : index
    %c0_5 = arith.constant 0 : index
    %9 = vector.load %arg3[%c0_4, %c0_5] : memref<128x128xf32, #tpu.memory_space<vmem>>, vector<128x128xf32>
    %cst = arith.constant dense<0.000000e+00> : vector<8x128xf32>
    %10 = tpu.matmul %8, %9, %cst {dimension_numbers = #tpu.dot_dimension_numbers<[1], [0], [0], [1], [0, 0, 1, 1], [], []>} : vector<8x128xf32>, vector<128x128xf32>, vector<8x128xf32> -> vector<8x128xf32>
    %c0_6 = arith.constant 0 : index
    %c0_7 = arith.constant 0 : index
    %11 = vector.load %arg5[%c0_6, %c0_7] : memref<2x128xf32, #tpu.memory_space<vmem>>, vector<1x128xf32>
    %12 = vector.broadcast %11 : vector<1x128xf32> to vector<8x128xf32>
    %13 = arith.addf %10, %12 : vector<8x128xf32>
    %14 = arith.negf %13 : vector<8x128xf32>
    %15 = math.exp %14 : vector<8x128xf32>
    %cst_8 = arith.constant 1.000000e+00 : f32
    %16 = vector.broadcast %cst_8 : f32 to vector<8x128xf32>
    %17 = arith.addf %16, %15 : vector<8x128xf32>
    %18 = arith.divf %16, %17 : vector<8x128xf32>
    %19 = arith.mulf %13, %18 : vector<8x128xf32>
    %c0_9 = arith.constant 0 : index
    %c0_10 = arith.constant 0 : index
    %20 = vector.load %arg4[%c0_9, %c0_10] : memref<128x128xf32, #tpu.memory_space<vmem>>, vector<128x128xf32>
    %cst_11 = arith.constant dense<0.000000e+00> : vector<8x128xf32>
    %21 = tpu.matmul %19, %20, %cst_11 {dimension_numbers = #tpu.dot_dimension_numbers<[1], [0], [0], [1], [0, 0, 1, 1], [], []>} : vector<8x128xf32>, vector<128x128xf32>, vector<8x128xf32> -> vector<8x128xf32>
    %c1_12 = arith.constant 1 : index
    %c0_13 = arith.constant 0 : index
    %22 = vector.load %arg5[%c1_12, %c0_13] : memref<2x128xf32, #tpu.memory_space<vmem>>, vector<1x128xf32>
    %23 = vector.broadcast %22 : vector<1x128xf32> to vector<8x128xf32>
    %24 = arith.addf %21, %23 : vector<8x128xf32>
    %c0_14 = arith.constant 0 : index
    %c0_15 = arith.constant 0 : index
    %25 = vector.load %arg6[%c0_14, %c0_15] : memref<8x128xf32, #tpu.memory_space<vmem>>, vector<8x128xf32>
    tpu.vector_store %arg6[%c0_14, %c0_15], %24 {strides = array<i32>} : memref<8x128xf32, #tpu.memory_space<vmem>>, vector<8x128xf32>,
    return
  }
  func.func @transform_0(%arg0: i32) -> (i32, i32) {
    %c0_i32 = arith.constant 0 : i32
    %c0_i32_0 = arith.constant 0 : i32
    return %arg0, %c0_i32 : i32, i32
  }
  func.func @transform_1(%arg0: i32) -> (i32, i32) {
    %c0_i32 = arith.constant 0 : i32
    %c0_i32_0 = arith.constant 0 : i32
    %c0_i32_1 = arith.constant 0 : i32
    return %c0_i32, %c0_i32_0 : i32, i32
  }
  func.func @transform_2(%arg0: i32) -> (i32, i32) {
    %c0_i32 = arith.constant 0 : i32
    %c0_i32_0 = arith.constant 0 : i32
    %c0_i32_1 = arith.constant 0 : i32
    return %c0_i32, %c0_i32_0 : i32, i32
  }
  func.func @transform_3(%arg0: i32) -> (i32, i32) {
    %c0_i32 = arith.constant 0 : i32
    %c0_i32_0 = arith.constant 0 : i32
    %c0_i32_1 = arith.constant 0 : i32
    return %c0_i32, %c0_i32_0 : i32, i32
  }
  func.func @transform_4(%arg0: i32) -> (i32, i32) {
    %c0_i32 = arith.constant 0 : i32
    %c0_i32_0 = arith.constant 0 : i32
    %c0_i32_1 = arith.constant 0 : i32
    return %c0_i32, %c0_i32_0 : i32, i32
  }
  func.func @transform_5(%arg0: i32) -> (i32, i32) {
    %c0_i32 = arith.constant 0 : i32
    %c0_i32_0 = arith.constant 0 : i32
    return %arg0, %c0_i32 : i32, i32
  }
}

</mosaic_0001>

<llo_original>
// kernel: time_embedding_forward.1
$region0: #{time_embedding_forward.1}
  #allocation0 [shape = 'u32[]', space=smem, size = 0x4, offset = 0x4, fixed_abs, tag = 'smem constant byte address 0x4 - core index']
  #allocation1 [shape = 'u32[144,128]{1,0:T(1,128)}', space=vmem, size = 0x12000, scoped, tag = 'internal scratch']
  %s0 = inlined_call_operand.vmem [shape: f32[8,1], index: 0, kind: input, shape index: {}]
  %s1 = inlined_call_operand.vmem [shape: f32[2,128], index: 1, kind: input, shape index: {}]
  %s2 = inlined_call_operand.hbm [shape: f32[128,128], index: 2, kind: input, shape index: {}]
  %s3 = inlined_call_operand.hbm [shape: f32[128,128], index: 3, kind: input, shape index: {}]
  %s4 = inlined_call_operand.vmem [shape: f32[2,128], index: 4, kind: input, shape index: {}]
  %s5 = inlined_call_operand.hbm [shape: f32[8,128], index: 5, kind: output, shape index: {}]
  %s6 = sld [smem:[#allocation0]]
  $region38: #{time_embedding_forward.1} parent=0
    _
  %s8 = ssub.s32 1, %s6
  %s9 = scalar_select 0, %s8, %s6
  $region1: #{time_embedding_forward.1} parent=0
    #allocation2 [shape = 'u8[65536]{0}', space=vmem, size = 0x10000, scoped, tag = 'input window, operand 2, single buffered']
    #allocation3 [shape = 's32[1]{0}', space=sflag, size = 0x4, scoped, tag = 'scoped memory for time_embedding_forward.1']
    #allocation4 [shape = 's32[1]{0}', space=sflag, size = 0x4, scoped, tag = 'scoped memory for time_embedding_forward.1']
    #allocation5 [shape = 'u8[65536]{0}', space=vmem, size = 0x10000, scoped, tag = 'input window, operand 3, single buffered']
    #allocation6 [shape = 's32[1]{0}', space=sflag, size = 0x4, scoped, tag = 'scoped memory for time_embedding_forward.1']
    #allocation7 [shape = 'u8[4096]{0}', space=vmem, size = 0x1000, scoped, tag = 'output window, operand 0, single buffered']
    %10 = vsyncpa [#allocation3], 0
    %11 = vsyncpa [#allocation6], 0
    %12 = vsyncpa [#allocation4], 0
    // Predicated region
    $region2: #{time_embedding_forward.1} parent=1 // pred_check
      _
    $region3: #{time_embedding_forward.1} parent=1 // pred_check_branch
      %14 = sbr.rel (0) target = $region5
    $region4: #{time_embedding_forward.1} parent=1 // pred_region
      _
    $region5: #{time_embedding_forward.1} parent=1 // pred_fallthru
      _
    // Predicated region
    $region6: #{time_embedding_forward.1} parent=1 // pred_check
      _
    $region7: #{time_embedding_forward.1} parent=1 // pred_check_branch
      %16 = sbr.rel (0) target = $region9
    $region8: #{time_embedding_forward.1} parent=1 // pred_region
      _
    $region9: #{time_embedding_forward.1} parent=1 // pred_fallthru
      _
    // Predicated region
    $region10: #{time_embedding_forward.1} parent=1 // pred_check
      _
    $region11: #{time_embedding_forward.1} parent=1 // pred_check_branch
      %18 = sbr.rel (0) target = $region13
    $region12: #{time_embedding_forward.1} parent=1 // pred_region
      %s20 = ssub.s32 2048, 2048
      %21 = vsyncadd [#allocation3], %s20
      %s22 = sshll.u32 [#allocation2], 4
      %s23 = int_to_ptr.vmem [resolvable:$true] %s22
      %28 = dma.hbm_to_vmem [thread:$0]  %s2, 2048, %s23, [#allocation3], 128, 128, 8
    $region13: #{time_embedding_forward.1} parent=1 // pred_fallthru
      _
    // Predicated region
    $region14: #{time_embedding_forward.1} parent=1 // pred_check
      _
    $region15: #{time_embedding_forward.1} parent=1 // pred_check_branch
      %30 = sbr.rel (0) target = $region17
    $region16: #{time_embedding_forward.1} parent=1 // pred_region
      %s32 = ssub.s32 2048, 2048
      %33 = vsyncadd [#allocation6], %s32
      %s34 = sshll.u32 [#allocation5], 4
      %s35 = int_to_ptr.vmem [resolvable:$true] %s34
      %40 = dma.hbm_to_vmem [thread:$0]  %s3, 2048, %s35, [#allocation6], 128, 128, 8
    $region17: #{time_embedding_forward.1} parent=1 // pred_fallthru
      _
    // Predicated region
    $region18: #{time_embedding_forward.1} parent=1 // pred_check
      _
    $region19: #{time_embedding_forward.1} parent=1 // pred_check_branch
      %42 = sbr.rel (0) target = $region21
    $region20: #{time_embedding_forward.1} parent=1 // pred_region
      _
    $region21: #{time_embedding_forward.1} parent=1 // pred_fallthru
      _
    // Predicated region
    $region22: #{time_embedding_forward.1} parent=1 // pred_check
      _
    $region23: #{time_embedding_forward.1} parent=1 // pred_check_branch
      %44 = sbr.rel (0) target = $region25
    $region24: #{time_embedding_forward.1} parent=1 // pred_region
      %45 = dma.done [#allocation3], 2048
    $region25: #{time_embedding_forward.1} parent=1 // pred_fallthru
      _
    // Predicated region
    $region26: #{time_embedding_forward.1} parent=1 // pred_check
      _
    $region27: #{time_embedding_forward.1} parent=1 // pred_check_branch
      %47 = sbr.rel (0) target = $region29
    $region28: #{time_embedding_forward.1} parent=1 // pred_region
      %48 = dma.done [#allocation6], 2048
    $region29: #{time_embedding_forward.1} parent=1 // pred_fallthru
      _
    %v49 = vld [vmem:[%s1] sm:$0x1]
    %v50 = vld [vmem:[%s1 + $0x1] sm:$0x1]
    %v51 = vld [vmem:[%s0] sm:$0xff]
    %53 = vset.pattern.permute.xlu0 0
    %54 = vperm.xlu0 %53, %v51
    %v55 = vpop.permute.xlu0 %54
    %v57 = vlaneseq
    %v58 = vshrl.u32 %v57, 7
    %v59 = vsub.s32 0, %v58
    %v60 = vrot.slane %v49, %v59
    %v61 = vmul.f32 %v55, %v60
    %v62 = vlaneseq
    %v63 = vshrl.u32 %v62, 7
    %v64 = vsub.s32 0, %v63
    %v65 = vrot.slane %v50, %v64
    %v66 = vadd.f32 %v61, %v65
    %v67 = vand.u32 2147483647, %v66
    %vm68 = vcmp.le.f32.partialorder %v67, 0.7853982
    %vm69 = vcmp.lt.s32.totalorder %v66, 0
    %v70 = vand.u32 %v66, 2139095040
    %v71 = vshrl.u32 %v70, 23
    %v72 = vsub.s32 %v71, 127
    %v73 = vand.u32 2147483647, %v66
    %v74 = vand.u32 %v73, 8388607
    %v75 = vor.u32 %v74, 8388608
    %v76 = vsub.s32 0, %v75
    %v77 = vadd.s32 %v72, 1
    %vm78 = vcmp.gt.s32.totalorder %v77, 0
    %v79 = vsel %vm78, %v77, 0
    %v80 = vshrl.u32 %v79, 5
    %v81 = vand.u32 %v79, 31
    %v82 = vsub.s32 32, %v81
    %v83 = vshrl.u32 683565275, %v82
    %v84 = vshll.u32 683565275, %v81
    %v85 = vshrl.u32 2475754826, %v82
    %v86 = vor.u32 %v84, %v85
    %v87 = vshll.u32 2475754826, %v81
    %v88 = vshrl.u32 2131351028, %v82
    %v89 = vor.u32 %v87, %v88
    %v90 = vshll.u32 2131351028, %v81
    %v91 = vshrl.u32 2102212464, %v82
    %v92 = vor.u32 %v90, %v91
    %v93 = vshll.u32 2102212464, %v81
    %v94 = vshrl.u32 920167782, %v82
    %v95 = vor.u32 %v93, %v94
    %v96 = vshll.u32 920167782, %v81
    %v97 = vshrl.u32 1326507024, %v82
    %v98 = vor.u32 %v96, %v97
    %vm99 = vcmp.lt.s32.totalorder %v80, 1
    %vm100 = vcmp.lt.s32.totalorder %v80, 2
    %vm101 = vcmp.lt.s32.totalorder %v80, 3
    %vm102 = vcmp.lt.s32.totalorder %v80, 4
    %v103 = vsel %vm99, %v83, %v86
    %v104 = vsel %vm102, %v92, 2102212464
    %v105 = vsel %vm101, %v89, %v104
    %v106 = vsel %vm100, %v103, %v105
    %v107 = vsel %vm99, %v86, %v89
    %v108 = vsel %vm102, %v95, 920167782
    %v109 = vsel %vm101, %v92, %v108
    %v110 = vsel %vm100, %v107, %v109
    %v111 = vsel %vm99, %v89, %v92
    %v112 = vsel %vm102, %v98, 1326507024
    %v113 = vsel %vm101, %v95, %v112
    %v114 = vsel %vm100, %v111, %v113
    %v115 = vshll.u32 %v75, 8
    %v116 = vmul.u32.u64.compose %v115, %v114
    %v117 = vextract.low.u32 %v116
    %v118 = vextract.high.u32 %v116
    %v119 = vmul.u32.u64.compose %v115, %v110
    %v120 = vextract.low.u32 %v119
    %v121 = vextract.high.u32 %v119
    %v122 = vmul.u32 %v115, %v106
    %v123 = vadd.s32 %v118, %v120
    %vm124 = vc.u32 %v118, %v120
    %v125 = vadd.s32 %v121, 1
    %v126 = vsel %vm124, %v125, %v121
    %v127 = vadd.s32 %v122, %v126
    %v128 = vadd.s32 %v127, 536870912
    %v129 = vshrl.u32 %v128, 30
    %v130 = vshll.u32 %v129, 30
    %v131 = vsub.s32 %v127, %v130
    %vm132 = vcmp.lt.s32.totalorder %v131, 0
    %v133 = vsub.s32 0, %v131
    %v134 = vsel %vm132, %v133, %v131
    %v135 = vclz %v134
    %v136 = vsub.s32 %v135, 2
    %vm137 = vcmp.gt.s32.totalorder 0, %v136
    %v138 = vsel %vm137, 0, %v136
    %v139 = vsub.s32 32, %v138
    %v140 = vshll.u32 %v131, %v138
    %v141 = vshrl.u32 %v123, %v139
    %v142 = vor.u32 %v140, %v141
    %v143 = vsub.s32 4294967266, %v138
    %v144 = vadd.s32 %v143, 127
    %v145 = vshll.u32 %v144, 23
    %v146 = vor.u32 4788187, %v145
    %v147 = vand.u32 2147483647, %v146
    %v149 = vcvt.s32.f32 %v142
    %v150 = vmul.f32 %v149, %v147
    %v151 = vxor.u32 %v150, 2147483648
    %v152 = vsel %vm69, %v151, %v150
    %v153 = vsub.s32 4, %v129
    %v154 = vsel %vm69, %v153, %v129
    %v155 = vsel %vm68, %v66, %v152
    %v156 = vsel %vm68, 0, %v154
    %v157 = vcosq.f32.pop %v155
    %v158 = vsinq.f32.pop %v155
    %vm159 = vweird.f32 %v66
    %v160 = vadd.s32 %v156, 3
    %v161 = vand.u32 %v160, 3
    %vm162 = vcmp.lt.s32.totalorder %v161, 2
    %vm163 = vcmp.eq.s32.totalorder %v161, 0
    %v164 = vxor.u32 %v158, 2147483648
    %v165 = vsel %vm163, %v157, %v164
    %vm166 = vcmp.eq.s32.totalorder %v161, 2
    %v167 = vxor.u32 %v157, 2147483648
    %v168 = vsel %vm166, %v167, %v158
    %v169 = vsel %vm162, %v165, %v168
    %v170 = vsel %vm159, nan, %v169
    %v171 = vld [vmem:[#allocation2] sm:$0xff]
    %v172 = vld [vmem:[#allocation2 + $0x8] sm:$0xff]
    %v173 = vld [vmem:[#allocation2 + $0x10] sm:$0xff]
    %v174 = vld [vmem:[#allocation2 + $0x18] sm:$0xff]
    %v175 = vld [vmem:[#allocation2 + $0x20] sm:$0xff]
    %v176 = vld [vmem:[#allocation2 + $0x28] sm:$0xff]
    %v177 = vld [vmem:[#allocation2 + $0x30] sm:$0xff]
    %v178 = vld [vmem:[#allocation2 + $0x38] sm:$0xff]
    %v179 = vld [vmem:[#allocation2 + $0x40] sm:$0xff]
    %v180 = vld [vmem:[#allocation2 + $0x48] sm:$0xff]
    %v181 = vld [vmem:[#allocation2 + $0x50] sm:$0xff]
    %v182 = vld [vmem:[#allocation2 + $0x58] sm:$0xff]
    %v183 = vld [vmem:[#allocation2 + $0x60] sm:$0xff]
    %v184 = vld [vmem:[#allocation2 + $0x68] sm:$0xff]
    %v185 = vld [vmem:[#allocation2 + $0x70] sm:$0xff]
    %v186 = vld [vmem:[#allocation2 + $0x78] sm:$0xff]
    %v187 = vld [vmem:[%s4] sm:$0x1]
    %v188 = vlaneseq
    %v189 = vshrl.u32 %v188, 7
    %v190 = vsub.s32 0, %v189
    %v191 = vrot.slane %v187, %v190
    %192 = vmatprep.subr.mxu0 0.0
    %193 = vmatpush1.msra.mxu0 %v186
    %194 = vmatprep.subr.mxu0 0.0
    %195 = vmatpush1.msra.mxu0 %v185
    %196 = vmatprep.subr.mxu0 0.0
    %197 = vmatpush1.msra.mxu0 %v184
    %198 = vmatprep.subr.mxu0 0.0
    %199 = vmatpush1.msra.mxu0 %v183
    %200 = vmatprep.subr.mxu0 0.0
    %201 = vmatpush1.msra.mxu0 %v182
    %202 = vmatprep.subr.mxu0 0.0
    %203 = vmatpush1.msra.mxu0 %v181
    %204 = vmatprep.subr.mxu0 0.0
    %205 = vmatpush1.msra.mxu0 %v180
    %206 = vmatprep.subr.mxu0 0.0
    %207 = vmatpush1.msra.mxu0 %v179
    %208 = vmatprep.subr.mxu0 0.0
    %209 = vmatpush1.msra.mxu0 %v178
    %210 = vmatprep.subr.mxu0 0.0
    %211 = vmatpush1.msra.mxu0 %v177
    %212 = vmatprep.subr.mxu0 0.0
    %213 = vmatpush1.msra.mxu0 %v176
    %214 = vmatprep.subr.mxu0 0.0
    %215 = vmatpush1.msra.mxu0 %v175
    %216 = vmatprep.subr.mxu0 0.0
    %217 = vmatpush1.msra.mxu0 %v174
    %218 = vmatprep.subr.mxu0 0.0
    %219 = vmatpush1.msra.mxu0 %v173
    %220 = vmatprep.subr.mxu0 0.0
    %221 = vmatpush1.msra.mxu0 %v172
    %222 = vmatprep.subr.mxu0 0.0
    %223 = vmatpush1.msra.mxu0 %v171
    %224 = vmatprep.subr.mxu0 0.0
    %225 = vmatpush2.msra.mxu0 0.0
    %226 = vmatprep.subr.mxu0 0.0
    %227 = vmatpush2.msra.mxu0 0.0
    %228 = vmatprep.subr.mxu0 0.0
    %229 = vmatpush2.msra.mxu0 0.0
    %230 = vmatprep.subr.mxu0 0.0
    %231 = vmatpush2.msra.mxu0 0.0
    %232 = vmatprep.subr.mxu0 0.0
    %233 = vmatpush2.msra.mxu0 0.0
    %234 = vmatprep.subr.mxu0 0.0
    %235 = vmatpush2.msra.mxu0 0.0
    %236 = vmatprep.subr.mxu0 0.0
    %237 = vmatpush2.msra.mxu0 0.0
    %238 = vmatprep.subr.mxu0 0.0
    %239 = vmatpush2.msra.mxu0 0.0
    %240 = vmatprep.subr.mxu0 0.0
    %241 = vmatpush2.msra.mxu0 0.0
    %242 = vmatprep.subr.mxu0 0.0
    %243 = vmatpush2.msra.mxu0 0.0
    %244 = vmatprep.subr.mxu0 0.0
    %245 = vmatpush2.msra.mxu0 0.0
    %246 = vmatprep.subr.mxu0 0.0
    %247 = vmatpush2.msra.mxu0 0.0
    %248 = vmatprep.subr.mxu0 0.0
    %249 = vmatpush2.msra.mxu0 0.0
    %250 = vmatprep.subr.mxu0 0.0
    %251 = vmatpush2.msra.mxu0 0.0
    %252 = vmatprep.subr.mxu0 0.0
    %253 = vmatpush2.msra.mxu0 0.0
    %254 = vmatprep.subr.mxu0 0.0
    %255 = vmatpush2.msra.mxu0 0.0
    %256 = vmatprep.mubr.f32.mxu0 0.0
    %257 = vmatmul.mubr.f32.gmra.mxu0 %v170
    %v258 = vpop.f32.mrf.mxu0
    %v259 = vadd.f32 %v191, %v258
    %v260 = vpop.f32.mrf.mxu0
    %261 = vdwg.mxu0
    %v262 = vxor.u32 %v259, 2147483648
    %v263 = vmul.f32 %v262, 1.442695
    %v264 = vpow.pop %v263
    %v265 = vadd.f32 %v264, 1.0
    %v266 = vrcp.pop %v265
    %v267 = vmul.f32 1.0, %v266
    %v268 = vmul.f32 %v259, %v267
    %v269 = vld [vmem:[#allocation5] sm:$0xff]
    %v270 = vld [vmem:[#allocation5 + $0x8] sm:$0xff]
    %v271 = vld [vmem:[#allocation5 + $0x10] sm:$0xff]
    %v272 = vld [vmem:[#allocation5 + $0x18] sm:$0xff]
    %v273 = vld [vmem:[#allocation5 + $0x20] sm:$0xff]
    %v274 = vld [vmem:[#allocation5 + $0x28] sm:$0xff]
    %v275 = vld [vmem:[#allocation5 + $0x30] sm:$0xff]
    %v276 = vld [vmem:[#allocation5 + $0x38] sm:$0xff]
    %v277 = vld [vmem:[#allocation5 + $0x40] sm:$0xff]
    %v278 = vld [vmem:[#allocation5 + $0x48] sm:$0xff]
    %v279 = vld [vmem:[#allocation5 + $0x50] sm:$0xff]
    %v280 = vld [vmem:[#allocation5 + $0x58] sm:$0xff]
    %v281 = vld [vmem:[#allocation5 + $0x60] sm:$0xff]
    %v282 = vld [vmem:[#allocation5 + $0x68] sm:$0xff]
    %v283 = vld [vmem:[#allocation5 + $0x70] sm:$0xff]
    %v284 = vld [vmem:[#allocation5 + $0x78] sm:$0xff]
    %v285 = vld [vmem:[%s4 + $0x1] sm:$0x1]
    %v286 = vlaneseq
    %v287 = vshrl.u32 %v286, 7
    %v288 = vsub.s32 0, %v287
    %v289 = vrot.slane %v285, %v288
    %290 = vmatprep.subr.mxu0 0.0
    %291 = vmatpush1.msra.mxu0 %v284
    %292 = vmatprep.subr.mxu0 0.0
    %293 = vmatpush1.msra.mxu0 %v283
    %294 = vmatprep.subr.mxu0 0.0
    %295 = vmatpush1.msra.mxu0 %v282
    %296 = vmatprep.subr.mxu0 0.0
    %297 = vmatpush1.msra.mxu0 %v281
    %298 = vmatprep.subr.mxu0 0.0
    %299 = vmatpush1.msra.mxu0 %v280
    %300 = vmatprep.subr.mxu0 0.0
    %301 = vmatpush1.msra.mxu0 %v279
    %302 = vmatprep.subr.mxu0 0.0
    %303 = vmatpush1.msra.mxu0 %v278
    %304 = vmatprep.subr.mxu0 0.0
    %305 = vmatpush1.msra.mxu0 %v277
    %306 = vmatprep.subr.mxu0 0.0
    %307 = vmatpush1.msra.mxu0 %v276
    %308 = vmatprep.subr.mxu0 0.0
    %309 = vmatpush1.msra.mxu0 %v275
    %310 = vmatprep.subr.mxu0 0.0
    %311 = vmatpush1.msra.mxu0 %v274
    %312 = vmatprep.subr.mxu0 0.0
    %313 = vmatpush1.msra.mxu0 %v273
    %314 = vmatprep.subr.mxu0 0.0
    %315 = vmatpush1.msra.mxu0 %v272
    %316 = vmatprep.subr.mxu0 0.0
    %317 = vmatpush1.msra.mxu0 %v271
    %318 = vmatprep.subr.mxu0 0.0
    %319 = vmatpush1.msra.mxu0 %v270
    %320 = vmatprep.subr.mxu0 0.0
    %321 = vmatpush1.msra.mxu0 %v269
    %322 = vmatprep.subr.mxu0 0.0
    %323 = vmatpush2.msra.mxu0 0.0
    %324 = vmatprep.subr.mxu0 0.0
    %325 = vmatpush2.msra.mxu0 0.0
    %326 = vmatprep.subr.mxu0 0.0
    %327 = vmatpush2.msra.mxu0 0.0
    %328 = vmatprep.subr.mxu0 0.0
    %329 = vmatpush2.msra.mxu0 0.0
    %330 = vmatprep.subr.mxu0 0.0
    %331 = vmatpush2.msra.mxu0 0.0
    %332 = vmatprep.subr.mxu0 0.0
    %333 = vmatpush2.msra.mxu0 0.0
    %334 = vmatprep.subr.mxu0 0.0
    %335 = vmatpush2.msra.mxu0 0.0
    %336 = vmatprep.subr.mxu0 0.0
    %337 = vmatpush2.msra.mxu0 0.0
    %338 = vmatprep.subr.mxu0 0.0
    %339 = vmatpush2.msra.mxu0 0.0
    %340 = vmatprep.subr.mxu0 0.0
    %341 = vmatpush2.msra.mxu0 0.0
    %342 = vmatprep.subr.mxu0 0.0
    %343 = vmatpush2.msra.mxu0 0.0
    %344 = vmatprep.subr.mxu0 0.0
    %345 = vmatpush2.msra.mxu0 0.0
    %346 = vmatprep.subr.mxu0 0.0
    %347 = vmatpush2.msra.mxu0 0.0
    %348 = vmatprep.subr.mxu0 0.0
    %349 = vmatpush2.msra.mxu0 0.0
    %350 = vmatprep.subr.mxu0 0.0
    %351 = vmatpush2.msra.mxu0 0.0
    %352 = vmatprep.subr.mxu0 0.0
    %353 = vmatpush2.msra.mxu0 0.0
    %354 = vmatprep.mubr.f32.mxu0 0.0
    %355 = vmatmul.mubr.f32.gmra.mxu0 %v268
    %v356 = vpop.f32.mrf.mxu0
    %v357 = vadd.f32 %v289, %v356
    %v358 = vpop.f32.mrf.mxu0
    %359 = vdwg.mxu0
    %360 = vst [vmem:[#allocation7] sm:$0xff] %v357
    // Predicated region
    $region30: #{time_embedding_forward.1} parent=1 // pred_check
      _
    $region31: #{time_embedding_forward.1} parent=1 // pred_check_branch
      %362 = sbr.rel (0) target = $region33
    $region32: #{time_embedding_forward.1} parent=1 // pred_region
      %s364 = ssub.s32 128, 128
      %365 = vsyncadd [#allocation4], %s364
      %s367 = sshll.u32 [#allocation7], 4
      %s368 = int_to_ptr.vmem [resolvable:$true] %s367
      %370 = dma.vmem_to_hbm [thread:$0]  %s368, 128, %s5, [#allocation4]
    $region33: #{time_embedding_forward.1} parent=1 // pred_fallthru
      _
    // Predicated region
    $region34: #{time_embedding_forward.1} parent=1 // pred_check
      _
    $region35: #{time_embedding_forward.1} parent=1 // pred_check_branch
      %372 = sbr.rel (0) target = $region37
    $region36: #{time_embedding_forward.1} parent=1 // pred_region
      %373 = dma.done [#allocation4], 128
    $region37: #{time_embedding_forward.1} parent=1 // pred_fallthru
      _
    %374 = vsyncpa [#allocation3], 1
    %375 = vsyncpa [#allocation6], 1
    %376 = vsyncpa [#allocation4], 1

</llo_original>
